<compile_context>
chip_gen: v5e
topology: v5e:2x2
jax: 0.10.0
libtpu: 0.0.40
codegen_flags: <defaults>
</compile_context>

<pallas_src>
import jax
import jax.numpy as jnp
import numpy as np
from jax.experimental import pallas as pl
from jax.experimental.pallas import tpu as pltpu


def _round_up(x, m):
    return ((x + m - 1) // m) * m


def decoder_kernel(idx_ref, edge_ref, scores_ref, w_e_ref, b_ref, out_ref):
    """Processes one tile of TILE_E edges.

    idx_ref   : [2, TILE_E] int32   (row 0 = src node id, row 1 = dst node id)
    edge_ref  : [TILE_E, H]         edge_hidden tile
    scores_ref: [2, N_pad] f32      precomputed node scores (row0=src, row1=dst)
    w_e_ref   : [1, H]              Linear weights for the edge_hidden chunk
    b_ref     : [1, 1]  (SMEM)      bias
    out_ref   : [1, 1, TILE_E]      lane-dense output row for this tile
    """
    n_pad = scores_ref.shape[1]
    tile_e = edge_ref.shape[0]

    # Edge-hidden contribution, emitted directly as a lane-dense row:
    #   [1, H] . [TILE_E, H]^T -> [1, TILE_E]   (contract over H on the MXU)
    edge_part = jax.lax.dot_general(
        w_e_ref[...], edge_ref[...],
        dimension_numbers=(((1,), (1,)), ((), ())),
        preferred_element_type=jnp.float32)                         # [1, TILE_E]

    # Scalar-score gather via MXU contraction with f32 one-hot masks.
    # Padded node rows (>= N) have zero scores, and padded edges use index 0,
    # so they contribute nothing to the real outputs.
    src_ids = idx_ref[0:1, :]                                       # [1, TILE_E]
    dst_ids = idx_ref[1:2, :]                                       # [1, TILE_E]
    node_iota = jax.lax.broadcasted_iota(jnp.int32, (n_pad, tile_e), 0)
    onehot_src = (node_iota == src_ids).astype(jnp.float32)         # [N_pad, TILE_E]
    onehot_dst = (node_iota == dst_ids).astype(jnp.float32)         # [N_pad, TILE_E]
    gather_part = (
        jnp.dot(scores_ref[0:1, :], onehot_src,
                preferred_element_type=jnp.float32) +
        jnp.dot(scores_ref[1:2, :], onehot_dst,
                preferred_element_type=jnp.float32))                # [1, TILE_E]

    out_row = edge_part + gather_part + b_ref[0, 0]                 # [1, TILE_E]
    out_ref[...] = out_row.reshape(1, 1, tile_e).astype(out_ref.dtype)


def decoder_forward(node_hidden, edge_hidden, edge_index, weight, bias,
                    *, tile_e=2048):
    """Pallas equivalent of Decoder.forward.

    node_hidden: [N, H], edge_hidden: [E, H], edge_index: [2, E] (int),
    weight: [1, 3H] (nn.Linear layout), bias: [1].  Returns [E, 1].
    """
    n_nodes, hidden = node_hidden.shape
    n_edges = edge_hidden.shape[0]
    out_dtype = jnp.result_type(edge_hidden.dtype, node_hidden.dtype, weight.dtype)

    # Split the Linear(3H -> 1) weight into its three H-sized chunks.
    w = weight.reshape(3, hidden)                                   # rows: edge, src, dst
    w_e_row = w[0:1, :]                                             # [1, H]
    w_sd_cols = w[1:3, :].T                                         # [H, 2]
    b = bias.reshape(1, 1).astype(jnp.float32)                      # SMEM scalar

    # Hoisted per-node scalar scores (one small XLA matmul, done ONCE):
    #   scores[:, 0] = node_hidden @ w_src,  scores[:, 1] = node_hidden @ w_dst
    scores = jnp.dot(node_hidden, w_sd_cols,
                     preferred_element_type=jnp.float32)            # [N, 2]
    n_pad = _round_up(max(n_nodes, 1), 128)
    scores_t = jnp.pad(scores.T, ((0, 0), (0, n_pad - n_nodes)))    # [2, N_pad]

    # Tile / pad the edge axis to a lane-friendly multiple of 128.  Keep the
    # grid >= 2 steps when the problem allows it (both v7x TensorCores busy).
    e_128 = _round_up(max(n_edges, 1), 128)
    tile_e = max(128, min(_round_up(tile_e, 128), e_128))
    if e_128 // tile_e < 2 and e_128 >= 256:
        tile_e = _round_up((e_128 + 1) // 2, 128)
    e_pad = _round_up(max(n_edges, 1), tile_e)
    grid = (e_pad // tile_e,)

    edge_hidden_p = jnp.pad(edge_hidden, ((0, e_pad - n_edges), (0, 0)))
    edge_idx = jnp.pad(edge_index.astype(jnp.int32),
                       ((0, 0), (0, e_pad - n_edges)))              # [2, E_pad]

    out = pl.pallas_call(
        decoder_kernel,
        grid=grid,
        in_specs=[
            pl.BlockSpec((2, tile_e), lambda i: (0, i)),            # edge_index tile
            pl.BlockSpec((tile_e, hidden), lambda i: (i, 0)),       # edge_hidden tile
            pl.BlockSpec((2, n_pad), lambda i: (0, 0)),             # node scores (resident)
            pl.BlockSpec((1, hidden), lambda i: (0, 0)),            # w_e (resident)
            pl.BlockSpec(memory_space=pltpu.MemorySpace.SMEM),      # bias scalar
        ],
        out_specs=pl.BlockSpec((1, 1, tile_e), lambda i: (i, 0, 0)),
        out_shape=jax.ShapeDtypeStruct((grid[0], 1, tile_e), out_dtype),
        compiler_params=pltpu.CompilerParams(
            dimension_semantics=("parallel",)),
    )(edge_idx, edge_hidden_p, scores_t, w_e_row, b)

    # Drop the padded edges and restore the PyTorch [E, 1] shape.
    return out.reshape(-1)[:n_edges].reshape(n_edges, 1)


if __name__ == "__main__":
    key = jax.random.PRNGKey(0)
    k1, k2, k3, k4, k5, k6 = jax.random.split(key, 6)

    N = 16          # number of nodes
    E = 24          # number of edges
    H = 32          # hidden_dim

    node_hidden = jax.random.normal(k1, (N, H), dtype=jnp.float32)
    edge_hidden = jax.random.normal(k2, (E, H), dtype=jnp.float32)
    edge_index = jnp.stack([
        jax.random.randint(k3, (E,), 0, N),
        jax.random.randint(k4, (E,), 0, N),
    ], axis=0)                                           # [2, E] like PyG

    # Deterministic "nn.Linear(3H, 1)" parameters.
    bound = 1.0 / np.sqrt(3 * H)
    weight = jax.random.uniform(k5, (1, 3 * H), minval=-bound, maxval=bound,
                                dtype=jnp.float32)
    bias = jax.random.uniform(k6, (1,), minval=-bound, maxval=bound,
                              dtype=jnp.float32)

    out = decoder_forward(node_hidden, edge_hidden, edge_index, weight, bias)
    out = jax.block_until_ready(out)

    # Plain-JAX reference (matches PyTorch forward exactly).
    src_h = node_hidden[edge_index[0]]
    dst_h = node_hidden[edge_index[1]]
    cat = jnp.concatenate([edge_hidden, src_h, dst_h], axis=-1)   # [E, 3H]
    ref = cat @ weight.T + bias                                   # [E, 1]

    assert out.shape == (E, 1), out.shape
    np.testing.assert_allclose(np.asarray(out), np.asarray(ref),
                               rtol=1e-5, atol=1e-5)
    print("KERNEL_OK")
</pallas_src>

<mosaic_0001>
module attributes {stable_mosaic.version = 11 : i64} {
  func.func @decoder_kernel(%arg0: i32, %arg1: memref<2x128xi32, #tpu.memory_space<vmem>>, %arg2: memref<128x32xf32, #tpu.memory_space<vmem>>, %arg3: memref<2x128xf32, #tpu.memory_space<vmem>>, %arg4: memref<1x32xf32, #tpu.memory_space<vmem>>, %arg5: memref<1x1xf32, #tpu.memory_space<smem>>, %arg6: memref<1x1x128xf32, #tpu.memory_space<vmem>>) attributes {dimension_semantics = [#tpu.dimension_semantics<parallel>], iteration_bounds = array<i64: 1>, scalar_prefetch = 0 : i64, scratch_operands = 0 : i64, tpu.core_type = #tpu.core_type<tc>, window_params = [{transform_indices = @transform_0, window_bounds = array<i64: 2, 128>}, {transform_indices = @transform_1, window_bounds = array<i64: 128, 32>}, {pipeline_mode = #tpu.pipeline_mode<synchronous>, transform_indices = @transform_2, window_bounds = array<i64: 2, 128>}, {pipeline_mode = #tpu.pipeline_mode<synchronous>, transform_indices = @transform_3, window_bounds = array<i64: 1, 32>}, {transform_indices = @transform_4, window_bounds = array<i64: 1, 1>}, {transform_indices = @transform_5, window_bounds = array<i64: 1, 1, 128>}]} {
    %c0 = arith.constant 0 : index
    %c0_0 = arith.constant 0 : index
    %0 = vector.load %arg4[%c0, %c0_0] : memref<1x32xf32, #tpu.memory_space<vmem>>, vector<1x32xf32>
    %c0_1 = arith.constant 0 : index
    %c0_2 = arith.constant 0 : index
    %1 = vector.load %arg2[%c0_1, %c0_2] : memref<128x32xf32, #tpu.memory_space<vmem>>, vector<128x32xf32>
    %cst = arith.constant dense<0.000000e+00> : vector<1x128xf32>
    %2 = tpu.matmul %0, %1, %cst {dimension_numbers = #tpu.dot_dimension_numbers<[1], [1], [0], [0], [0, 0, 1, 0], [], []>} : vector<1x32xf32>, vector<128x32xf32>, vector<1x128xf32> -> vector<1x128xf32>
    %c0_3 = arith.constant 0 : index
    %c0_4 = arith.constant 0 : index
    %3 = vector.load %arg1[%c0_3, %c0_4] : memref<2x128xi32, #tpu.memory_space<vmem>>, vector<1x128xi32>
    %c1 = arith.constant 1 : index
    %c0_5 = arith.constant 0 : index
    %4 = vector.load %arg1[%c1, %c0_5] : memref<2x128xi32, #tpu.memory_space<vmem>>, vector<1x128xi32>
    %5 = tpu.iota {dimensions = array<i32: 0>} : vector<128x128xi32>
    %6 = vector.broadcast %3 : vector<1x128xi32> to vector<128x128xi32>
    %7 = arith.cmpi eq, %5, %6 : vector<128x128xi32>
    %8 = arith.extui %7 : vector<128x128xi1> to vector<128x128xi32>
    %9 = arith.sitofp %8 : vector<128x128xi32> to vector<128x128xf32>
    %10 = vector.broadcast %4 : vector<1x128xi32> to vector<128x128xi32>
    %11 = arith.cmpi eq, %5, %10 : vector<128x128xi32>
    %12 = arith.extui %11 : vector<128x128xi1> to vector<128x128xi32>
    %13 = arith.sitofp %12 : vector<128x128xi32> to vector<128x128xf32>
    %c0_6 = arith.constant 0 : index
    %c0_7 = arith.constant 0 : index
    %14 = vector.load %arg3[%c0_6, %c0_7] : memref<2x128xf32, #tpu.memory_space<vmem>>, vector<1x128xf32>
    %cst_8 = arith.constant dense<0.000000e+00> : vector<1x128xf32>
    %15 = tpu.matmul %14, %9, %cst_8 {dimension_numbers = #tpu.dot_dimension_numbers<[1], [0], [0], [1], [0, 0, 1, 1], [], []>} : vector<1x128xf32>, vector<128x128xf32>, vector<1x128xf32> -> vector<1x128xf32>
    %c1_9 = arith.constant 1 : index
    %c0_10 = arith.constant 0 : index
    %16 = vector.load %arg3[%c1_9, %c0_10] : memref<2x128xf32, #tpu.memory_space<vmem>>, vector<1x128xf32>
    %cst_11 = arith.constant dense<0.000000e+00> : vector<1x128xf32>
    %17 = tpu.matmul %16, %13, %cst_11 {dimension_numbers = #tpu.dot_dimension_numbers<[1], [0], [0], [1], [0, 0, 1, 1], [], []>} : vector<1x128xf32>, vector<128x128xf32>, vector<1x128xf32> -> vector<1x128xf32>
    %18 = arith.addf %15, %17 : vector<1x128xf32>
    %19 = arith.addf %2, %18 : vector<1x128xf32>
    %c0_12 = arith.constant 0 : index
    %c0_13 = arith.constant 0 : index
    %20 = memref.load %arg5[%c0_12, %c0_13] : memref<1x1xf32, #tpu.memory_space<smem>>
    %21 = vector.broadcast %20 : f32 to vector<1x128xf32>
    %22 = arith.addf %19, %21 : vector<1x128xf32>
    %23 = vector.shape_cast %22 : vector<1x128xf32> to vector<1x1x128xf32>
    %c0_14 = arith.constant 0 : index
    %c0_15 = arith.constant 0 : index
    %c0_16 = arith.constant 0 : index
    %24 = vector.load %arg6[%c0_14, %c0_15, %c0_16] : memref<1x1x128xf32, #tpu.memory_space<vmem>>, vector<1x1x128xf32>
    tpu.vector_store %arg6[%c0_14, %c0_15, %c0_16], %23 {strides = array<i32>} : memref<1x1x128xf32, #tpu.memory_space<vmem>>, vector<1x1x128xf32>,
    return
  }
  func.func @transform_0(%arg0: i32) -> (i32, i32) {
    %c0_i32 = arith.constant 0 : i32
    %c0_i32_0 = arith.constant 0 : i32
    return %c0_i32, %arg0 : i32, i32
  }
  func.func @transform_1(%arg0: i32) -> (i32, i32) {
    %c0_i32 = arith.constant 0 : i32
    %c0_i32_0 = arith.constant 0 : i32
    return %arg0, %c0_i32 : i32, i32
  }
  func.func @transform_2(%arg0: i32) -> (i32, i32) {
    %c0_i32 = arith.constant 0 : i32
    %c0_i32_0 = arith.constant 0 : i32
    %c0_i32_1 = arith.constant 0 : i32
    return %c0_i32, %c0_i32_0 : i32, i32
  }
  func.func @transform_3(%arg0: i32) -> (i32, i32) {
    %c0_i32 = arith.constant 0 : i32
    %c0_i32_0 = arith.constant 0 : i32
    %c0_i32_1 = arith.constant 0 : i32
    return %c0_i32, %c0_i32_0 : i32, i32
  }
  func.func @transform_4(%arg0: i32) -> (i32, i32) {
    %c0_i32 = arith.constant 0 : i32
    %c0_i32_0 = arith.constant 0 : i32
    %c0_i32_1 = arith.constant 0 : i32
    return %c0_i32, %c0_i32_0 : i32, i32
  }
  func.func @transform_5(%arg0: i32) -> (i32, i32, i32) {
    %c0_i32 = arith.constant 0 : i32
    %c0_i32_0 = arith.constant 0 : i32
    %c0_i32_1 = arith.constant 0 : i32
    return %arg0, %c0_i32, %c0_i32_0 : i32, i32, i32
  }
}

</mosaic_0001>

<llo_original>
// kernel: tpu_custom_call.1
$region0: #{tpu_custom_call.1}
  #allocation0 [shape = 'u32[]', space=smem, size = 0x4, offset = 0x4, fixed_abs, tag = 'smem constant byte address 0x4 - core index']
  #allocation1 [shape = 'u32[72,128]{1,0:T(1,128)}', space=vmem, size = 0x9000, scoped, tag = 'internal scratch']
  #allocation2 [shape = 'f32[1,1]{1,0:T(1,128)S(6)}', space=smem, size = 0x200, scoped, tag = 'scoped memory for tpu_custom_call.1']
  %s0 = inlined_call_operand.vmem [shape: s32[2,128], index: 0, kind: input, shape index: {}]
  %s1 = inlined_call_operand.vmem [shape: f32[128,32], index: 1, kind: input, shape index: {}]
  %s2 = inlined_call_operand.vmem [shape: f32[2,128], index: 2, kind: input, shape index: {}]
  %s3 = inlined_call_operand.vmem [shape: f32[1,32], index: 3, kind: input, shape index: {}]
  %s4 = inlined_call_operand.<no memory space> [shape: f32[1,1], index: 4, kind: input, shape index: {}]
  %s5 = inlined_call_operand.hbm [shape: f32[1,1,128], index: 5, kind: output, shape index: {}]
  %s6 = sld [smem:[#allocation0]]
  $region30: #{tpu_custom_call.1} parent=0
    _
  %s8 = ssub.s32 1, %s6
  %s9 = scalar_select 0, %s8, %s6
  %10 = sst [smem:[#allocation2]] %s4
  $region1: #{tpu_custom_call.1} parent=0
    #allocation3 [shape = 'u8[512]{0}', space=vmem, size = 0x400, scoped, tag = 'output window, operand 0, single buffered']
    #allocation4 [shape = 's32[1]{0}', space=sflag, size = 0x4, scoped, tag = 'scoped memory for tpu_custom_call.1']
    %11 = vsyncpa [#allocation4], 0
    // Predicated region
    $region2: #{tpu_custom_call.1} parent=1 // pred_check
      _
    $region3: #{tpu_custom_call.1} parent=1 // pred_check_branch
      %13 = sbr.rel (0) target = $region5
    $region4: #{tpu_custom_call.1} parent=1 // pred_region
      _
    $region5: #{tpu_custom_call.1} parent=1 // pred_fallthru
      _
    // Predicated region
    $region6: #{tpu_custom_call.1} parent=1 // pred_check
      _
    $region7: #{tpu_custom_call.1} parent=1 // pred_check_branch
      %15 = sbr.rel (0) target = $region9
    $region8: #{tpu_custom_call.1} parent=1 // pred_region
      _
    $region9: #{tpu_custom_call.1} parent=1 // pred_fallthru
      _
    // Predicated region
    $region10: #{tpu_custom_call.1} parent=1 // pred_check
      _
    $region11: #{tpu_custom_call.1} parent=1 // pred_check_branch
      %17 = sbr.rel (0) target = $region13
    $region12: #{tpu_custom_call.1} parent=1 // pred_region
      _
    $region13: #{tpu_custom_call.1} parent=1 // pred_fallthru
      _
    // Predicated region
    $region14: #{tpu_custom_call.1} parent=1 // pred_check
      _
    $region15: #{tpu_custom_call.1} parent=1 // pred_check_branch
      %19 = sbr.rel (0) target = $region17
    $region16: #{tpu_custom_call.1} parent=1 // pred_region
      _
    $region17: #{tpu_custom_call.1} parent=1 // pred_fallthru
      _
    // Predicated region
    $region18: #{tpu_custom_call.1} parent=1 // pred_check
      _
    $region19: #{tpu_custom_call.1} parent=1 // pred_check_branch
      %21 = sbr.rel (0) target = $region21
    $region20: #{tpu_custom_call.1} parent=1 // pred_region
      _
    $region21: #{tpu_custom_call.1} parent=1 // pred_fallthru
      _
    %v22 = vld [vmem:[%s3] sm:$0x1]
    %v23 = vld [vmem:[%s1] sm:$0xff]
    %v24 = vld [vmem:[%s1 + $0x8] sm:$0xff]
    %v25 = vld [vmem:[%s1 + $0x10] sm:$0xff]
    %v26 = vld [vmem:[%s1 + $0x18] sm:$0xff]
    %v27 = vld [vmem:[%s1 + $0x20] sm:$0xff]
    %v28 = vld [vmem:[%s1 + $0x28] sm:$0xff]
    %v29 = vld [vmem:[%s1 + $0x30] sm:$0xff]
    %v30 = vld [vmem:[%s1 + $0x38] sm:$0xff]
    %v31 = vld [vmem:[%s1 + $0x40] sm:$0xff]
    %v32 = vld [vmem:[%s1 + $0x48] sm:$0xff]
    %v33 = vld [vmem:[%s1 + $0x50] sm:$0xff]
    %v34 = vld [vmem:[%s1 + $0x58] sm:$0xff]
    %v35 = vld [vmem:[%s1 + $0x60] sm:$0xff]
    %v36 = vld [vmem:[%s1 + $0x68] sm:$0xff]
    %v37 = vld [vmem:[%s1 + $0x70] sm:$0xff]
    %v38 = vld [vmem:[%s1 + $0x78] sm:$0xff]
    %v39 = vld [vmem:[%s0] sm:$0x1]
    %v40 = vld [vmem:[%s0 + $0x1] sm:$0x1]
    %v41 = vlaneseq
    %v42 = vshrl.u32 %v41, 7
    %v43 = vadd.s32 %v42, 8
    %v44 = vadd.s32 %v42, 16
    %v45 = vadd.s32 %v42, 24
    %v46 = vadd.s32 %v42, 32
    %v47 = vadd.s32 %v42, 40
    %v48 = vadd.s32 %v42, 48
    %v49 = vadd.s32 %v42, 56
    %v50 = vadd.s32 %v42, 64
    %v51 = vadd.s32 %v42, 72
    %v52 = vadd.s32 %v42, 80
    %v53 = vadd.s32 %v42, 88
    %v54 = vadd.s32 %v42, 96
    %v55 = vadd.s32 %v42, 104
    %v56 = vadd.s32 %v42, 112
    %v57 = vadd.s32 %v42, 120
    %v58 = vperm.slane %v39, 0
    %vm59 = vcmp.eq.s32.totalorder %v42, %v58
    %vm60 = vcmp.eq.s32.totalorder %v43, %v58
    %vm61 = vcmp.eq.s32.totalorder %v44, %v58
    %vm62 = vcmp.eq.s32.totalorder %v45, %v58
    %vm63 = vcmp.eq.s32.totalorder %v46, %v58
    %vm64 = vcmp.eq.s32.totalorder %v47, %v58
    %vm65 = vcmp.eq.s32.totalorder %v48, %v58
    %vm66 = vcmp.eq.s32.totalorder %v49, %v58
    %vm67 = vcmp.eq.s32.totalorder %v50, %v58
    %vm68 = vcmp.eq.s32.totalorder %v51, %v58
    %vm69 = vcmp.eq.s32.totalorder %v52, %v58
    %vm70 = vcmp.eq.s32.totalorder %v53, %v58
    %vm71 = vcmp.eq.s32.totalorder %v54, %v58
    %vm72 = vcmp.eq.s32.totalorder %v55, %v58
    %vm73 = vcmp.eq.s32.totalorder %v56, %v58
    %vm74 = vcmp.eq.s32.totalorder %v57, %v58
    %v75 = vsel %vm59, 1, 0
    %v76 = vsel %vm60, 1, 0
    %v77 = vsel %vm61, 1, 0
    %v78 = vsel %vm62, 1, 0
    %v79 = vsel %vm63, 1, 0
    %v80 = vsel %vm64, 1, 0
    %v81 = vsel %vm65, 1, 0
    %v82 = vsel %vm66, 1, 0
    %v83 = vsel %vm67, 1, 0
    %v84 = vsel %vm68, 1, 0
    %v85 = vsel %vm69, 1, 0
    %v86 = vsel %vm70, 1, 0
    %v87 = vsel %vm71, 1, 0
    %v88 = vsel %vm72, 1, 0
    %v89 = vsel %vm73, 1, 0
    %v90 = vsel %vm74, 1, 0
    %v91 = vcvt.s32.f32 %v75
    %v92 = vcvt.s32.f32 %v76
    %v93 = vcvt.s32.f32 %v77
    %v94 = vcvt.s32.f32 %v78
    %v95 = vcvt.s32.f32 %v79
    %v96 = vcvt.s32.f32 %v80
    %v97 = vcvt.s32.f32 %v81
    %v98 = vcvt.s32.f32 %v82
    %v99 = vcvt.s32.f32 %v83
    %v100 = vcvt.s32.f32 %v84
    %v101 = vcvt.s32.f32 %v85
    %v102 = vcvt.s32.f32 %v86
    %v103 = vcvt.s32.f32 %v87
    %v104 = vcvt.s32.f32 %v88
    %v105 = vcvt.s32.f32 %v89
    %v106 = vcvt.s32.f32 %v90
    %v107 = vperm.slane %v40, 0
    %vm108 = vcmp.eq.s32.totalorder %v42, %v107
    %vm109 = vcmp.eq.s32.totalorder %v43, %v107
    %vm110 = vcmp.eq.s32.totalorder %v44, %v107
    %vm111 = vcmp.eq.s32.totalorder %v45, %v107
    %vm112 = vcmp.eq.s32.totalorder %v46, %v107
    %vm113 = vcmp.eq.s32.totalorder %v47, %v107
    %vm114 = vcmp.eq.s32.totalorder %v48, %v107
    %vm115 = vcmp.eq.s32.totalorder %v49, %v107
    %vm116 = vcmp.eq.s32.totalorder %v50, %v107
    %vm117 = vcmp.eq.s32.totalorder %v51, %v107
    %vm118 = vcmp.eq.s32.totalorder %v52, %v107
    %vm119 = vcmp.eq.s32.totalorder %v53, %v107
    %vm120 = vcmp.eq.s32.totalorder %v54, %v107
    %vm121 = vcmp.eq.s32.totalorder %v55, %v107
    %vm122 = vcmp.eq.s32.totalorder %v56, %v107
    %vm123 = vcmp.eq.s32.totalorder %v57, %v107
    %v124 = vsel %vm108, 1, 0
    %v125 = vsel %vm109, 1, 0
    %v126 = vsel %vm110, 1, 0
    %v127 = vsel %vm111, 1, 0
    %v128 = vsel %vm112, 1, 0
    %v129 = vsel %vm113, 1, 0
    %v130 = vsel %vm114, 1, 0
    %v131 = vsel %vm115, 1, 0
    %v132 = vsel %vm116, 1, 0
    %v133 = vsel %vm117, 1, 0
    %v134 = vsel %vm118, 1, 0
    %v135 = vsel %vm119, 1, 0
    %v136 = vsel %vm120, 1, 0
    %v137 = vsel %vm121, 1, 0
    %v138 = vsel %vm122, 1, 0
    %v139 = vsel %vm123, 1, 0
    %v140 = vcvt.s32.f32 %v124
    %v141 = vcvt.s32.f32 %v125
    %v142 = vcvt.s32.f32 %v126
    %v143 = vcvt.s32.f32 %v127
    %v144 = vcvt.s32.f32 %v128
    %v145 = vcvt.s32.f32 %v129
    %v146 = vcvt.s32.f32 %v130
    %v147 = vcvt.s32.f32 %v131
    %v148 = vcvt.s32.f32 %v132
    %v149 = vcvt.s32.f32 %v133
    %v150 = vcvt.s32.f32 %v134
    %v151 = vcvt.s32.f32 %v135
    %v152 = vcvt.s32.f32 %v136
    %v153 = vcvt.s32.f32 %v137
    %v154 = vcvt.s32.f32 %v138
    %v155 = vcvt.s32.f32 %v139
    %v156 = vld [vmem:[%s2] sm:$0x1]
    %v157 = vld [vmem:[%s2 + $0x1] sm:$0x1]
    %158 = vmatpush.msra.mxu0 %v155
    %159 = vmatpush.msra.mxu0 %v154
    %160 = vmatpush.msra.mxu0 %v153
    %161 = vmatpush.msra.mxu0 %v152
    %162 = vmatpush.msra.mxu0 %v151
    %163 = vmatpush.msra.mxu0 %v150
    %164 = vmatpush.msra.mxu0 %v149
    %165 = vmatpush.msra.mxu0 %v148
    %166 = vmatpush.msra.mxu0 %v147
    %167 = vmatpush.msra.mxu0 %v146
    %168 = vmatpush.msra.mxu0 %v145
    %169 = vmatpush.msra.mxu0 %v144
    %170 = vmatpush.msra.mxu0 %v143
    %171 = vmatpush.msra.mxu0 %v142
    %172 = vmatpush.msra.mxu0 %v141
    %173 = vmatpush.msra.mxu0 %v140
    %174 = vmatmul.f32.gmra.mxu0 %v157
    %v175 = vpop.f32.mrf.mxu0
    %v176 = vadd.f32 0.0, %v175
    %177 = vdwg.mxu0
    %178 = vmatpush.msra.mxu0 %v106
    %179 = vmatpush.msra.mxu0 %v105
    %180 = vmatpush.msra.mxu0 %v104
    %181 = vmatpush.msra.mxu0 %v103
    %182 = vmatpush.msra.mxu0 %v102
    %183 = vmatpush.msra.mxu0 %v101
    %184 = vmatpush.msra.mxu0 %v100
    %185 = vmatpush.msra.mxu0 %v99
    %186 = vmatpush.msra.mxu0 %v98
    %187 = vmatpush.msra.mxu0 %v97
    %188 = vmatpush.msra.mxu0 %v96
    %189 = vmatpush.msra.mxu0 %v95
    %190 = vmatpush.msra.mxu0 %v94
    %191 = vmatpush.msra.mxu0 %v93
    %192 = vmatpush.msra.mxu0 %v92
    %193 = vmatpush.msra.mxu0 %v91
    %194 = vmatmul.f32.gmra.mxu0 %v156
    %v195 = vpop.f32.mrf.mxu0
    %v196 = vadd.f32 %v176, %v195
    %197 = vdwg.mxu0
    %vm198 = vcmask 261120
    %v200 = vsel %vm198, %v22, 0
    %v203 = vsel %vm198, %v23, 0
    %v206 = vsel %vm198, %v24, 0
    %v209 = vsel %vm198, %v25, 0
    %v212 = vsel %vm198, %v26, 0
    %v215 = vsel %vm198, %v27, 0
    %v218 = vsel %vm198, %v28, 0
    %v221 = vsel %vm198, %v29, 0
    %v224 = vsel %vm198, %v30, 0
    %v227 = vsel %vm198, %v31, 0
    %v230 = vsel %vm198, %v32, 0
    %v233 = vsel %vm198, %v33, 0
    %v236 = vsel %vm198, %v34, 0
    %v239 = vsel %vm198, %v35, 0
    %v242 = vsel %vm198, %v36, 0
    %v245 = vsel %vm198, %v37, 0
    %v248 = vsel %vm198, %v38, 0
    %250 = vmatpush.xpose.msra.mxu0 %v248
    %251 = vmatpush.xpose.msra.mxu0 %v245
    %252 = vmatpush.xpose.msra.mxu0 %v242
    %253 = vmatpush.xpose.msra.mxu0 %v239
    %254 = vmatpush.xpose.msra.mxu0 %v236
    %255 = vmatpush.xpose.msra.mxu0 %v233
    %256 = vmatpush.xpose.msra.mxu0 %v230
    %257 = vmatpush.xpose.msra.mxu0 %v227
    %258 = vmatpush.xpose.msra.mxu0 %v224
    %259 = vmatpush.xpose.msra.mxu0 %v221
    %260 = vmatpush.xpose.msra.mxu0 %v218
    %261 = vmatpush.xpose.msra.mxu0 %v215
    %262 = vmatpush.xpose.msra.mxu0 %v212
    %263 = vmatpush.xpose.msra.mxu0 %v209
    %264 = vmatpush.xpose.msra.mxu0 %v206
    %265 = vmatpush.xpose.msra.mxu0 %v203
    %266 = vmatmul.f32.gmra.mxu0 %v200
    %v267 = vpop.f32.mrf.mxu0
    %v268 = vadd.f32 %v196, %v267
    %269 = vdwg.mxu0
    %s270 = sld [smem:[#allocation2]]
    %v271 = vstv %s270
    %v272 = vadd.f32 %v268, %v271
    %273 = vst [vmem:[#allocation3] sm:$0x1] %v272
    // Predicated region
    $region22: #{tpu_custom_call.1} parent=1 // pred_check
      _
    $region23: #{tpu_custom_call.1} parent=1 // pred_check_branch
      %275 = sbr.rel (0) target = $region25
    $region24: #{tpu_custom_call.1} parent=1 // pred_region
      %277 = vsyncadd [#allocation4], 0
      %s279 = sshll.u32 [#allocation3], 4
      %s280 = int_to_ptr.vmem [resolvable:$true] %s279
      %s281 = sshll.u32 %s5, 4
      %s282 = int_to_ptr.hbm [resolvable:$true] %s281
      %284 = dma.vmem_to_hbm [thread:$0]  %s280, 16, %s282, [#allocation4]
    $region25: #{tpu_custom_call.1} parent=1 // pred_fallthru
      _
    // Predicated region
    $region26: #{tpu_custom_call.1} parent=1 // pred_check
      _
    $region27: #{tpu_custom_call.1} parent=1 // pred_check_branch
      %286 = sbr.rel (0) target = $region29
    $region28: #{tpu_custom_call.1} parent=1 // pred_region
      %288 = dma.done [#allocation4], 16
    $region29: #{tpu_custom_call.1} parent=1 // pred_fallthru
      _
    %289 = vsyncpa [#allocation4], 1

</llo_original>
